<compile_context>
chip_gen: v5e
topology: v5e:2x2
jax: 0.10.0
libtpu: 0.0.40
codegen_flags: <defaults>
</compile_context>

<pallas_src>
import functools

import jax
import jax.numpy as jnp
from jax.experimental import pallas as pl
from jax.experimental.pallas import tpu as pltpu


def _ce_kernel(logits_ref, tgt_ref, aux_ref, loss_ref, wsum_ref, *,
               n_classes, hw, tile_pixels, ignore_index, streamed_w):
    """One grid step (image n, pixel tile t).

    logits_ref: (1, C, TP)  native dtype (f32/bf16), pixels on lanes
    tgt_ref:    (1, 1, TP)  int32 class ids
    aux_ref:    (1, 1, TP)  f32 per-pixel weight  (streamed_w=True)
                (1, C, 1)   f32 per-class weight  (streamed_w=False)
    loss_ref:   (1, 1, 128) f32 lane-dense partial weighted-loss sums
    wsum_ref:   (1, 1, 128) f32 lane-dense partial weight sums
    """
    t = pl.program_id(1)
    start = t * tile_pixels

    logits = logits_ref[...].astype(jnp.float32)              # (1, C, TP)
    tgt = tgt_ref[...]                                         # (1, 1, TP)

    # Lanes past the end of the image (tail tile) hold undefined data -> mask.
    lane = jax.lax.broadcasted_iota(jnp.int32, (1, 1, tile_pixels), 2)
    in_bounds = (start + lane) < hw                            # (1, 1, TP)

    # Numerically stable log-sum-exp over the class (sublane) axis.
    m = jnp.max(logits, axis=1, keepdims=True)                 # (1, 1, TP)
    lse = jnp.log(jnp.sum(jnp.exp(logits - m), axis=1, keepdims=True)) + m

    # One-hot mask along the class axis ((1,C,1) iota: no CxTP int32 temporary).
    class_ids = jax.lax.broadcasted_iota(jnp.int32, (1, n_classes, 1), 1)
    onehot = class_ids == tgt                                  # (1, C, TP) bool
    tgt_logit = jnp.sum(jnp.where(onehot, logits, 0.0), axis=1, keepdims=True)

    if streamed_w:
        # Pre-gathered per-pixel weight (already 0 for ignored / invalid pixels).
        w = jnp.where(in_bounds, aux_ref[...], 0.0)            # (1, 1, TP)
        # select (not multiply) so garbage/NaN logits at masked pixels don't leak
        contrib = jnp.where(w != 0.0, w * (lse - tgt_logit), 0.0)
    else:
        # Gather the class weight with the same one-hot mask; validity in-kernel.
        cw = aux_ref[...].astype(jnp.float32)                  # (1, C, 1)
        valid = (in_bounds & (tgt != ignore_index)
                 & (tgt >= 0) & (tgt < n_classes))             # (1, 1, TP)
        w = jnp.sum(jnp.where(onehot, cw, 0.0), axis=1, keepdims=True)
        w = jnp.where(valid, w, 0.0)
        contrib = jnp.where(valid, w * (lse - tgt_logit), 0.0)

    # Fold the TP lanes down to 128 with tile-aligned VPU adds (TP = 128 * 2**k).
    def _fold128(x):
        while x.shape[-1] > 128:
            h = x.shape[-1] // 2
            x = x[:, :, :h] + x[:, :, h:]
        return x

    loss_ref[...] = _fold128(contrib)
    wsum_ref[...] = _fold128(w)


def _round_up(x, m):
    return -(-x // m) * m


def _vmem_capacity_bytes():
    try:
        info = pltpu.get_tpu_info()
        cap = int(getattr(info, "vmem_capacity_bytes", 0))
        if cap > 0:
            return cap
    except Exception:
        pass
    return 64 * 1024 * 1024          # conservative (v7x-sized) default


def _default_streamed_weight():
    # v7x: VALU-bound -> stream the pre-gathered per-pixel weight (less VPU work).
    # v5e/v6e: HBM-bound -> gather the weight in-kernel (less HBM traffic).
    try:
        kind = jax.devices()[0].device_kind.lower()
        return "v7" in kind
    except Exception:
        return False


def _pick_tile_pixels(n_imgs, n_classes, hw, itemsize, streamed_w, requested):
    if requested is None:
        vmem_cap = _vmem_capacity_bytes()
        sub = 8 * (4 // itemsize)                  # sublane pack: f32 -> 8, bf16 -> 16
        c_in = _round_up(n_classes, sub)           # padded sublanes of the input block
        c_f32 = _round_up(n_classes, 8)            # padded sublanes of f32 temporaries
        per_px = (2 * c_in * itemsize              # double-buffered logits block
                  + 2 * 4                          # double-buffered int32 targets
                  + 3 * c_f32 * 4                  # in-kernel CxTP f32 temporaries
                  + 10 * 4)                        # per-pixel f32 temporaries
        if streamed_w:
            per_px += 2 * 4                        # double-buffered per-pixel weight
        tp = int(vmem_cap * 0.35) // per_px
    else:
        tp = int(requested)
    tp = max(128, min(tp, 128 * 1024))
    tp = 128 << ((tp // 128).bit_length() - 1)     # power-of-two multiple of 128
    while tp > 128 and tp > hw:                    # don't exceed the image
        tp //= 2
    # keep >= 2 grid steps so the v7x megacore can split the parallel axes
    while tp > 128 and n_imgs * (_round_up(hw, tp) // tp) < 2:
        tp //= 2
    return tp


def cross_entropy_2d(logits_nchw, targets_nhw, class_weight=None,
                     ignore_index=-100, tile_pixels=None, streamed_weight=None):
    """Weighted, ignore-index 2D cross-entropy with 'mean' reduction."""
    N, C, H, W = logits_nchw.shape
    HW = H * W
    ignore_index = int(ignore_index)

    if streamed_weight is None:
        streamed_weight = _default_streamed_weight()

    # Free reshape: class on sublanes, pixels lane-dense.  No transpose, no pad.
    logits = logits_nchw.reshape(N, C, HW)
    tgt = targets_nhw.reshape(N, 1, HW).astype(jnp.int32)

    if class_weight is None:
        cw = jnp.ones((C,), jnp.float32)
    else:
        cw = jnp.asarray(class_weight, jnp.float32).reshape(C)

    itemsize = jnp.dtype(logits.dtype).itemsize
    tp = _pick_tile_pixels(N, C, HW, itemsize, streamed_weight, tile_pixels)

    hw_arr = HW
    if HW < tp:                       # only possible for tiny images (HW < 128)
        pad = tp - HW
        logits = jnp.pad(logits, ((0, 0), (0, 0), (0, pad)))
        tgt = jnp.pad(tgt, ((0, 0), (0, 0), (0, pad)),
                      constant_values=ignore_index)
        hw_arr = tp

    n_tiles = _round_up(hw_arr, tp) // tp
    grid = (N, n_tiles)
    n_steps = N * n_tiles

    data_map = lambda n, t: (n, 0, t)
    out_map = lambda n, t: (n * n_tiles + t, 0, 0)

    if streamed_weight:
        # TODO(synk): PyTorch raises on out-of-range (non-ignore) targets; data-
        # dependent errors can't be raised at trace time, such pixels are masked.
        valid = (tgt != ignore_index) & (tgt >= 0) & (tgt < C)
        aux = jnp.where(valid, cw[jnp.clip(tgt, 0, C - 1)], 0.0).astype(jnp.float32)
        aux_spec = pl.BlockSpec((1, 1, tp), data_map)
    else:
        aux = cw.reshape(1, C, 1)
        aux_spec = pl.BlockSpec((1, C, 1), lambda n, t: (0, 0, 0))

    kernel = functools.partial(
        _ce_kernel, n_classes=C, hw=HW, tile_pixels=tp,
        ignore_index=ignore_index, streamed_w=streamed_weight)

    vmem_cap = _vmem_capacity_bytes()
    cost = pl.CostEstimate(
        flops=8 * N * HW * C,
        transcendentals=N * HW * (C + 1),
        bytes_accessed=(N * C * HW * itemsize + N * HW * 4
                        + (N * HW * 4 if streamed_weight else 4 * C)
                        + n_steps * 2 * 128 * 4),
    )

    loss_p, wsum_p = pl.pallas_call(
        kernel,
        out_shape=(jax.ShapeDtypeStruct((n_steps, 1, 128), jnp.float32),
                   jax.ShapeDtypeStruct((n_steps, 1, 128), jnp.float32)),
        grid_spec=pltpu.PrefetchScalarGridSpec(
            num_scalar_prefetch=0,
            grid=grid,
            in_specs=[
                pl.BlockSpec((1, C, tp), data_map),
                pl.BlockSpec((1, 1, tp), data_map),
                aux_spec,
            ],
            out_specs=[
                pl.BlockSpec((1, 1, 128), out_map),
                pl.BlockSpec((1, 1, 128), out_map),
            ],
        ),
        compiler_params=pltpu.CompilerParams(
            dimension_semantics=("parallel", "parallel"),
            vmem_limit_bytes=int(vmem_cap * 0.85),
        ),
        cost_estimate=cost,
    )(logits, tgt, aux)

    # 'elementwise_mean' (== 'mean'): weighted-sum / weight-sum, reduced in JAX.
    return jnp.sum(loss_p) / jnp.sum(wsum_p)


class CrossEntropyLossPallas:
    """Mirror of the PyTorch module's forward (single tensor or list of tensors)."""

    def __init__(self, class_weight=None, ignore_index=-100):
        self.class_weight = class_weight
        self.ignore_index = ignore_index

    def __call__(self, inputs, targets, weights=None):
        if isinstance(inputs, (list, tuple)):
            if weights is None:
                weights = [1.0] * len(inputs)
            loss = 0.0
            for i in range(len(inputs)):
                tgt_i = targets[i] if isinstance(targets, (list, tuple)) else targets
                loss = loss + weights[i] * cross_entropy_2d(
                    inputs[i], tgt_i, self.class_weight, self.ignore_index)
            return loss
        return cross_entropy_2d(inputs, targets, self.class_weight,
                                self.ignore_index)


def _reference_ce(logits_nchw, targets_nhw, class_weight, ignore_index):
    """Pure-JAX reference for correctness checks."""
    N, C, H, W = logits_nchw.shape
    x = jnp.transpose(logits_nchw, (0, 2, 3, 1)).reshape(-1, C).astype(jnp.float32)
    t = targets_nhw.reshape(-1).astype(jnp.int32)
    lse = jax.scipy.special.logsumexp(x, axis=-1)
    tgt_logit = jnp.take_along_axis(x, jnp.clip(t, 0, C - 1)[:, None], axis=-1)[:, 0]
    wv = jnp.asarray(class_weight, jnp.float32)[jnp.clip(t, 0, C - 1)]
    valid = (t != ignore_index).astype(jnp.float32)
    num = jnp.sum(valid * wv * (lse - tgt_logit))
    den = jnp.sum(valid * wv)
    return num / den


if __name__ == "__main__":
    key = jax.random.PRNGKey(0)
    k1, k2, k3, k4 = jax.random.split(key, 4)

    # --- case 1: shapes matching the module's small test (2, 4, 16, 16) ---
    N, C, H, W = 2, 4, 16, 16
    ignore_index = -100
    logits = jax.random.normal(k1, (N, C, H, W), jnp.float32)
    targets = jax.random.randint(k2, (N, H, W), 0, C, jnp.int32)
    targets = targets.at[0, 0, :4].set(ignore_index)     # exercise ignore_index
    class_weight = jnp.linspace(0.5, 2.0, C, dtype=jnp.float32)

    ref = _reference_ce(logits, targets, class_weight, ignore_index)
    for streamed in (False, True):                        # validate both weight paths
        out = cross_entropy_2d(logits, targets, class_weight, ignore_index,
                               streamed_weight=streamed)
        out = jax.block_until_ready(out)
        assert jnp.allclose(out, ref, rtol=1e-5, atol=1e-5), (streamed, out, ref)

    # --- module-style wrapper: list-of-inputs (aux heads) path ---
    loss_mod = CrossEntropyLossPallas(class_weight=class_weight,
                                      ignore_index=ignore_index)
    out_list = loss_mod([logits, logits * 0.5], targets, weights=[1.0, 0.4])
    jax.block_until_ready(out_list)

    # --- case 2: HW not divisible by the tile -> exercises the masked tail tile ---
    N2, C2, H2, W2 = 1, 5, 18, 18
    logits2 = jax.random.normal(k3, (N2, C2, H2, W2), jnp.float32)
    targets2 = jax.random.randint(k4, (N2, H2, W2), 0, C2, jnp.int32)
    targets2 = targets2.at[0, -1, -3:].set(ignore_index)
    cw2 = jnp.ones((C2,), jnp.float32)
    ref2 = _reference_ce(logits2, targets2, cw2, ignore_index)
    out2 = jax.block_until_ready(
        cross_entropy_2d(logits2, targets2, cw2, ignore_index))
    assert jnp.allclose(out2, ref2, rtol=1e-5, atol=1e-5), (out2, ref2)

    # --- bf16 logits: native-dtype streaming, in-kernel f32 upcast ---
    ref_bf = _reference_ce(logits.astype(jnp.bfloat16), targets,
                           class_weight, ignore_index)
    out_bf = jax.block_until_ready(loss_mod(logits.astype(jnp.bfloat16), targets))
    assert jnp.allclose(out_bf, ref_bf, rtol=1e-3, atol=1e-3), (out_bf, ref_bf)

    print("KERNEL_OK")
</pallas_src>

<mosaic_0001>
module attributes {stable_mosaic.version = 11 : i64} {
  func.func @_ce_kernel(%arg0: i32, %arg1: i32, %arg2: memref<1x4x256xf32, #tpu.memory_space<vmem>>, %arg3: memref<1x1x256xi32, #tpu.memory_space<vmem>>, %arg4: memref<1x4x1xf32, #tpu.memory_space<vmem>>, %arg5: memref<1x1x128xf32, #tpu.memory_space<vmem>>, %arg6: memref<1x1x128xf32, #tpu.memory_space<vmem>>) attributes {dimension_semantics = [#tpu.dimension_semantics<parallel>, #tpu.dimension_semantics<parallel>], iteration_bounds = array<i64: 2, 1>, scalar_prefetch = 0 : i64, scratch_operands = 0 : i64, tpu.core_type = #tpu.core_type<tc>, window_params = [{transform_indices = @transform_0, window_bounds = array<i64: 1, 4, 256>}, {transform_indices = @transform_1, window_bounds = array<i64: 1, 1, 256>}, {pipeline_mode = #tpu.pipeline_mode<synchronous>, transform_indices = @transform_2, window_bounds = array<i64: 1, 4, 1>}, {transform_indices = @transform_3, window_bounds = array<i64: 1, 1, 128>}, {transform_indices = @transform_4, window_bounds = array<i64: 1, 1, 128>}]} {
    %c256_i32 = arith.constant 256 : i32
    %0 = arith.muli %arg1, %c256_i32 : i32
    %c0 = arith.constant 0 : index
    %c0_0 = arith.constant 0 : index
    %c0_1 = arith.constant 0 : index
    %1 = vector.load %arg2[%c0, %c0_0, %c0_1] : memref<1x4x256xf32, #tpu.memory_space<vmem>>, vector<1x4x256xf32>
    %c0_2 = arith.constant 0 : index
    %c0_3 = arith.constant 0 : index
    %c0_4 = arith.constant 0 : index
    %2 = vector.load %arg3[%c0_2, %c0_3, %c0_4] : memref<1x1x256xi32, #tpu.memory_space<vmem>>, vector<1x1x256xi32>
    %3 = tpu.iota {dimensions = array<i32: 2>} : vector<1x1x256xi32>
    %4 = vector.broadcast %0 : i32 to vector<1x1x256xi32>
    %5 = arith.addi %4, %3 : vector<1x1x256xi32>
    %c256_i32_5 = arith.constant 256 : i32
    %6 = vector.broadcast %c256_i32_5 : i32 to vector<1x1x256xi32>
    %7 = arith.cmpi slt, %5, %6 : vector<1x1x256xi32>
    %cst = arith.constant dense<0xFF800000> : vector<1x256xf32>
    %8 = vector.multi_reduction <maximumf>, %1, %cst [1] : vector<1x4x256xf32> to vector<1x256xf32>
    %9 = vector.shape_cast %8 : vector<1x256xf32> to vector<1x1x256xf32>
    %10 = vector.broadcast %9 : vector<1x1x256xf32> to vector<1x4x256xf32>
    %11 = arith.subf %1, %10 : vector<1x4x256xf32>
    %12 = math.exp %11 : vector<1x4x256xf32>
    %cst_6 = arith.constant dense<0.000000e+00> : vector<1x256xf32>
    %13 = vector.multi_reduction <add>, %12, %cst_6 [1] : vector<1x4x256xf32> to vector<1x256xf32>
    %14 = vector.shape_cast %13 : vector<1x256xf32> to vector<1x1x256xf32>
    %15 = math.log %14 : vector<1x1x256xf32>
    %16 = arith.addf %15, %9 : vector<1x1x256xf32>
    %17 = tpu.iota {dimensions = array<i32: 1>} : vector<1x4x1xi32>
    %18 = vector.broadcast %17 : vector<1x4x1xi32> to vector<1x4x256xi32>
    %19 = vector.broadcast %2 : vector<1x1x256xi32> to vector<1x4x256xi32>
    %20 = arith.cmpi eq, %18, %19 : vector<1x4x256xi32>
    %cst_7 = arith.constant 0.000000e+00 : f32
    %21 = vector.broadcast %cst_7 : f32 to vector<1x4x256xf32>
    %22 = arith.select %20, %1, %21 : vector<1x4x256xi1>, vector<1x4x256xf32>
    %cst_8 = arith.constant dense<0.000000e+00> : vector<1x256xf32>
    %23 = vector.multi_reduction <add>, %22, %cst_8 [1] : vector<1x4x256xf32> to vector<1x256xf32>
    %24 = vector.shape_cast %23 : vector<1x256xf32> to vector<1x1x256xf32>
    %c0_9 = arith.constant 0 : index
    %c0_10 = arith.constant 0 : index
    %c0_11 = arith.constant 0 : index
    %25 = vector.load %arg4[%c0_9, %c0_10, %c0_11] : memref<1x4x1xf32, #tpu.memory_space<vmem>>, vector<1x4x1xf32>
    %c-100_i32 = arith.constant -100 : i32
    %26 = vector.broadcast %c-100_i32 : i32 to vector<1x1x256xi32>
    %27 = arith.cmpi ne, %2, %26 : vector<1x1x256xi32>
    %28 = arith.andi %7, %27 : vector<1x1x256xi1>
    %c0_i32 = arith.constant 0 : i32
    %29 = vector.broadcast %c0_i32 : i32 to vector<1x1x256xi32>
    %30 = arith.cmpi sge, %2, %29 : vector<1x1x256xi32>
    %31 = arith.andi %28, %30 : vector<1x1x256xi1>
    %c4_i32 = arith.constant 4 : i32
    %32 = vector.broadcast %c4_i32 : i32 to vector<1x1x256xi32>
    %33 = arith.cmpi slt, %2, %32 : vector<1x1x256xi32>
    %34 = arith.andi %31, %33 : vector<1x1x256xi1>
    %cst_12 = arith.constant 0.000000e+00 : f32
    %35 = vector.shape_cast %25 : vector<1x4x1xf32> to vector<1x4x1xf32>
    %36 = vector.broadcast %35 : vector<1x4x1xf32> to vector<1x4x256xf32>
    %37 = vector.broadcast %cst_12 : f32 to vector<1x4x256xf32>
    %38 = arith.select %20, %36, %37 : vector<1x4x256xi1>, vector<1x4x256xf32>
    %cst_13 = arith.constant dense<0.000000e+00> : vector<1x256xf32>
    %39 = vector.multi_reduction <add>, %38, %cst_13 [1] : vector<1x4x256xf32> to vector<1x256xf32>
    %40 = vector.shape_cast %39 : vector<1x256xf32> to vector<1x1x256xf32>
    %cst_14 = arith.constant 0.000000e+00 : f32
    %41 = vector.broadcast %cst_14 : f32 to vector<1x1x256xf32>
    %42 = arith.select %34, %40, %41 : vector<1x1x256xi1>, vector<1x1x256xf32>
    %43 = arith.subf %16, %24 : vector<1x1x256xf32>
    %44 = arith.mulf %42, %43 : vector<1x1x256xf32>
    %cst_15 = arith.constant 0.000000e+00 : f32
    %45 = vector.broadcast %cst_15 : f32 to vector<1x1x256xf32>
    %46 = arith.select %34, %44, %45 : vector<1x1x256xi1>, vector<1x1x256xf32>
    %47 = vector.extract_strided_slice %46 {offsets = [0, 0, 0], sizes = [1, 1, 128], strides = [1, 1, 1]} : vector<1x1x256xf32> to vector<1x1x128xf32>
    %48 = vector.extract_strided_slice %46 {offsets = [0, 0, 128], sizes = [1, 1, 128], strides = [1, 1, 1]} : vector<1x1x256xf32> to vector<1x1x128xf32>
    %49 = arith.addf %47, %48 : vector<1x1x128xf32>
    %c0_16 = arith.constant 0 : index
    %c0_17 = arith.constant 0 : index
    %c0_18 = arith.constant 0 : index
    %50 = vector.load %arg5[%c0_16, %c0_17, %c0_18] : memref<1x1x128xf32, #tpu.memory_space<vmem>>, vector<1x1x128xf32>
    tpu.vector_store %arg5[%c0_16, %c0_17, %c0_18], %49 {strides = array<i32>} : memref<1x1x128xf32, #tpu.memory_space<vmem>>, vector<1x1x128xf32>,
    %51 = vector.extract_strided_slice %42 {offsets = [0, 0, 0], sizes = [1, 1, 128], strides = [1, 1, 1]} : vector<1x1x256xf32> to vector<1x1x128xf32>
    %52 = vector.extract_strided_slice %42 {offsets = [0, 0, 128], sizes = [1, 1, 128], strides = [1, 1, 1]} : vector<1x1x256xf32> to vector<1x1x128xf32>
    %53 = arith.addf %51, %52 : vector<1x1x128xf32>
    %c0_19 = arith.constant 0 : index
    %c0_20 = arith.constant 0 : index
    %c0_21 = arith.constant 0 : index
    %54 = vector.load %arg6[%c0_19, %c0_20, %c0_21] : memref<1x1x128xf32, #tpu.memory_space<vmem>>, vector<1x1x128xf32>
    tpu.vector_store %arg6[%c0_19, %c0_20, %c0_21], %53 {strides = array<i32>} : memref<1x1x128xf32, #tpu.memory_space<vmem>>, vector<1x1x128xf32>,
    return
  }
  func.func @transform_0(%arg0: i32, %arg1: i32) -> (i32, i32, i32) {
    %c0_i32 = arith.constant 0 : i32
    %c0_i32_0 = arith.constant 0 : i32
    return %arg0, %c0_i32, %arg1 : i32, i32, i32
  }
  func.func @transform_1(%arg0: i32, %arg1: i32) -> (i32, i32, i32) {
    %c0_i32 = arith.constant 0 : i32
    %c0_i32_0 = arith.constant 0 : i32
    return %arg0, %c0_i32, %arg1 : i32, i32, i32
  }
  func.func @transform_2(%arg0: i32, %arg1: i32) -> (i32, i32, i32) {
    %c0_i32 = arith.constant 0 : i32
    %c0_i32_0 = arith.constant 0 : i32
    %c0_i32_1 = arith.constant 0 : i32
    %c0_i32_2 = arith.constant 0 : i32
    return %c0_i32, %c0_i32_0, %c0_i32_1 : i32, i32, i32
  }
  func.func @transform_3(%arg0: i32, %arg1: i32) -> (i32, i32, i32) {
    %c1_i32 = arith.constant 1 : i32
    %0 = arith.muli %arg0, %c1_i32 : i32
    %1 = arith.addi %0, %arg1 : i32
    %c0_i32 = arith.constant 0 : i32
    %c0_i32_0 = arith.constant 0 : i32
    %c0_i32_1 = arith.constant 0 : i32
    return %1, %c0_i32, %c0_i32_0 : i32, i32, i32
  }
  func.func @transform_4(%arg0: i32, %arg1: i32) -> (i32, i32, i32) {
    %c1_i32 = arith.constant 1 : i32
    %0 = arith.muli %arg0, %c1_i32 : i32
    %1 = arith.addi %0, %arg1 : i32
    %c0_i32 = arith.constant 0 : i32
    %c0_i32_0 = arith.constant 0 : i32
    %c0_i32_1 = arith.constant 0 : i32
    return %1, %c0_i32, %c0_i32_0 : i32, i32, i32
  }
}

</mosaic_0001>

<llo_original>
// kernel: tpu_custom_call.1
$region0: #{tpu_custom_call.1}
  #allocation0 [shape = 'u32[]', space=smem, size = 0x4, offset = 0x4, fixed_abs, tag = 'smem constant byte address 0x4 - core index']
  #allocation1 [shape = 'u32[72,128]{1,0:T(1,128)}', space=vmem, size = 0x9000, scoped, tag = 'internal scratch']
  %s0 = inlined_call_operand.hbm [shape: f32[2,4,256], index: 0, kind: input, shape index: {}]
  %s1 = inlined_call_operand.vmem [shape: s32[2,1,256], index: 1, kind: input, shape index: {}]
  %s2 = inlined_call_operand.vmem [shape: f32[1,4,1], index: 2, kind: input, shape index: {}]
  %s3 = inlined_call_operand.hbm [shape: f32[2,1,128], index: 3, kind: output, shape index: {0}]
  %s4 = inlined_call_operand.hbm [shape: f32[2,1,128], index: 4, kind: output, shape index: {1}]
  %5 = xla_tuple %s3, %s4
  %s6 = sld [smem:[#allocation0]]
  $region57: #{tpu_custom_call.1} parent=0
    _
  %s8 = ssub.s32 1, %s6
  %s9 = scalar_select 0, %s8, %s6
  $region1: #{tpu_custom_call.1} parent=0
    #allocation2 [shape = 'u8[8192]{0}', space=vmem, size = 0x2000, scoped, tag = 'input window, operand 0']
    #allocation3 [shape = 's32[2]{0}', space=sflag, size = 0x8, scoped, tag = 'scoped memory for tpu_custom_call.1']
    #allocation4 [shape = 's32[2]{0}', space=sflag, size = 0x8, scoped, tag = 'scoped memory for tpu_custom_call.1']
    #allocation5 [shape = 'u8[1024]{0}', space=vmem, size = 0x400, scoped, tag = 'output window, operand 0']
    #allocation6 [shape = 'u8[1024]{0}', space=vmem, size = 0x400, scoped, tag = 'output window, operand 1']
    #allocation7 [shape = 's32[2]{0}', space=sflag, size = 0x8, scoped, tag = 'scoped memory for tpu_custom_call.1']
    %10 = vsyncpa [#allocation3], 0
    %s11 = scalar_lea.sflag [#allocation3], 1
    %12 = vsyncpa %s11, 0
    %13 = vsyncpa [#allocation4], 0
    %s14 = scalar_lea.sflag [#allocation4], 1
    %15 = vsyncpa %s14, 0
    %16 = vsyncpa [#allocation7], 0
    %s17 = scalar_lea.sflag [#allocation7], 1
    %18 = vsyncpa %s17, 0
    loop: start=0, step=1, limit=4
    $region2: #{tpu_custom_call.1} parent=1 // loop_pre_header
      _
    $region3: #{tpu_custom_call.1} parent=1 // loop_header
      %s20 = sphi 0, %s24
      %p21 = scmp.ge.s32.totalorder %s20, 4
      %s27 = sphi 0, %s39
      %s28 = sphi 0, %s35
      %s29 = sphi 0, %s27
      %s30 = sphi 0, %s28
      %s31 = sphi 0, %s29
      %s32 = sphi 0, %s30
      %s44 = sphi 0, %s46
      %s47 = sphi 0, %s44
      %s48 = sphi 0, %s47
      %s64 = sphi 0, %s48
      %s72 = sphi 0, %s74
      %s75 = sphi 0, %s72
      %s76 = sphi 0, %s75
      %s92 = sphi 0, %s76
      %s96 = sphi 0, %s96
      %s98 = sphi 0, %s96
      %s99 = sphi 0, %s98
      %s113 = sphi 0, %s99
      %s121 = sphi 0, %s123
      %s124 = sphi 0, %s121
      %s125 = sphi 0, %s124
      %s141 = sphi 0, %s125
      %s149 = sphi 0, %s151
      %s152 = sphi 0, %s149
      %s153 = sphi 0, %s152
      %s169 = sphi 0, %s153
    $region4: #{tpu_custom_call.1} parent=1 // loop_header_branch
      %23 = sbr.rel (%p21) target = $region8
    $region5: #{tpu_custom_call.1} parent=1 // loop_body
      %s25 = ssub.s32 %s20, 1
      %s26 = ssub.s32 %s20, 2
      %s33 = sadd.s32 1, %s28
      %p34 = scmp.ge.s32.totalorder %s33, 1
      %s35 = scalar_select %p34, 0, %s33
      %s36 = sadd.s32 1, %s27
      %s37 = scalar_select %p34, %s36, %s27
      %p38 = scmp.ge.s32.totalorder %s37, 2
      %s39 = scalar_select %p38, 0, %s37
      %s40 = ssub.s32 %s27, %s39
      %s41 = ssub.s32 %s28, %s35
      %s42 = sor.u32 %s40, %s41
      %p43 = scmp.eq.s32.totalorder %s42, 0
      %s45 = sadd.s32 %s44, 1
      %s46 = scalar_select %p43, %s44, %s45
      %p49 = pneg %p43
      %p50 = scmp.eq.s32.totalorder %s20, 1
      %p51 = por %p49, %p50
      %p52 = scmp.ne.s32.totalorder %s44, %s47
      %p53 = scmp.eq.s32.totalorder %s20, 0
      %p54 = por %p52, %p53
      %p55 = scmp.ne.s32.totalorder %s44, %s47
      %p56 = scmp.eq.s32.totalorder %s25, 1
      %p57 = por %p55, %p56
      %p58 = scmp.ne.s32.totalorder %s47, %s48
      %p59 = scmp.eq.s32.totalorder %s25, 0
      %p60 = por %p58, %p59
      %p61 = scmp.ne.s32.totalorder %s47, %s48
      %p62 = scmp.eq.s32.totalorder %s26, 1
      %p63 = por %p61, %p62
      %p65 = scmp.ne.s32.totalorder %s48, %s64
      %p66 = scmp.eq.s32.totalorder %s26, 0
      %p67 = por %p65, %p66
      %s68 = ssub.s32 %s27, %s39
      %s69 = ssub.s32 %s28, %s35
      %s70 = sor.u32 %s68, %s69
      %p71 = scmp.eq.s32.totalorder %s70, 0
      %s73 = sadd.s32 %s72, 1
      %s74 = scalar_select %p71, %s72, %s73
      %p77 = pneg %p71
      %p78 = scmp.eq.s32.totalorder %s20, 1
      %p79 = por %p77, %p78
      %p80 = scmp.ne.s32.totalorder %s72, %s75
      %p81 = scmp.eq.s32.totalorder %s20, 0
      %p82 = por %p80, %p81
      %p83 = scmp.ne.s32.totalorder %s72, %s75
      %p84 = scmp.eq.s32.totalorder %s25, 1
      %p85 = por %p83, %p84
      %p86 = scmp.ne.s32.totalorder %s75, %s76
      %p87 = scmp.eq.s32.totalorder %s25, 0
      %p88 = por %p86, %p87
      %p89 = scmp.ne.s32.totalorder %s75, %s76
      %p90 = scmp.eq.s32.totalorder %s26, 1
      %p91 = por %p89, %p90
      %p93 = scmp.ne.s32.totalorder %s76, %s92
      %p94 = scmp.eq.s32.totalorder %s26, 0
      %p95 = por %p93, %p94
      %s97 = sadd.s32 %s96, 1
      %p100 = scmp.eq.s32.totalorder %s20, 1
      %p101 = scmp.ne.s32.totalorder %s96, %s98
      %p102 = scmp.eq.s32.totalorder %s20, 0
      %p103 = por %p101, %p102
      %p104 = scmp.ne.s32.totalorder %s96, %s98
      %p105 = scmp.eq.s32.totalorder %s25, 1
      %p106 = por %p104, %p105
      %p107 = scmp.ne.s32.totalorder %s98, %s99
      %p108 = scmp.eq.s32.totalorder %s25, 0
      %p109 = por %p107, %p108
      %p110 = scmp.ne.s32.totalorder %s98, %s99
      %p111 = scmp.eq.s32.totalorder %s26, 1
      %p112 = por %p110, %p111
      %p114 = scmp.ne.s32.totalorder %s99, %s113
      %p115 = scmp.eq.s32.totalorder %s26, 0
      %p116 = por %p114, %p115
      %s117 = sadd.s32 %s27, %s28
      %s118 = sadd.s32 %s39, %s35
      %s119 = ssub.s32 %s117, %s118
      %p120 = scmp.eq.s32.totalorder %s119, 0
      %s122 = sadd.s32 %s121, 1
      %s123 = scalar_select %p120, %s121, %s122
      %p126 = pneg %p120
      %p127 = scmp.eq.s32.totalorder %s20, 1
      %p128 = por %p126, %p127
      %p129 = scmp.ne.s32.totalorder %s121, %s124
      %p130 = scmp.eq.s32.totalorder %s20, 0
      %p131 = por %p129, %p130
      %p132 = scmp.ne.s32.totalorder %s121, %s124
      %p133 = scmp.eq.s32.totalorder %s25, 1
      %p134 = por %p132, %p133
      %p135 = scmp.ne.s32.totalorder %s124, %s125
      %p136 = scmp.eq.s32.totalorder %s25, 0
      %p137 = por %p135, %p136
      %p138 = scmp.ne.s32.totalorder %s124, %s125
      %p139 = scmp.eq.s32.totalorder %s26, 1
      %p140 = por %p138, %p139
      %p142 = scmp.ne.s32.totalorder %s125, %s141
      %p143 = scmp.eq.s32.totalorder %s26, 0
      %p144 = por %p142, %p143
      %s145 = sadd.s32 %s27, %s28
      %s146 = sadd.s32 %s39, %s35
      %s147 = ssub.s32 %s145, %s146
      %p148 = scmp.eq.s32.totalorder %s147, 0
      %s150 = sadd.s32 %s149, 1
      %s151 = scalar_select %p148, %s149, %s150
      %p154 = pneg %p148
      %p155 = scmp.eq.s32.totalorder %s20, 1
      %p156 = por %p154, %p155
      %p157 = scmp.ne.s32.totalorder %s149, %s152
      %p158 = scmp.eq.s32.totalorder %s20, 0
      %p159 = por %p157, %p158
      %p160 = scmp.ne.s32.totalorder %s149, %s152
      %p161 = scmp.eq.s32.totalorder %s25, 1
      %p162 = por %p160, %p161
      %p163 = scmp.ne.s32.totalorder %s152, %s153
      %p164 = scmp.eq.s32.totalorder %s25, 0
      %p165 = por %p163, %p164
      %p166 = scmp.ne.s32.totalorder %s152, %s153
      %p167 = scmp.eq.s32.totalorder %s26, 1
      %p168 = por %p166, %p167
      %p170 = scmp.ne.s32.totalorder %s153, %s169
      %p171 = scmp.eq.s32.totalorder %s26, 0
      %p172 = por %p170, %p171
      %p173 = scmp.le.s32.totalorder 1, %s20
      %p174 = scmp.lt.s32.totalorder %s20, 3
      %p175 = pnand %p173, %p174
      %p176 = pneg %p175
      // Predicated region
      $region9: #{tpu_custom_call.1} parent=5 // pred_check
        _
      $region10: #{tpu_custom_call.1} parent=5 // pred_check_branch
        %178 = sbr.rel (%p175) target = $region12
      $region11: #{tpu_custom_call.1} parent=5 // pred_region
        %s179 = ssub.s32 %s20, 1
        // Predicated region
        $region13: #{tpu_custom_call.1} parent=11 // pred_check
          %p180 = pneg %p109
        $region14: #{tpu_custom_call.1} parent=11 // pred_check_branch
          %182 = sbr.rel (%p180) target = $region16
        $region15: #{tpu_custom_call.1} parent=11 // pred_region
          _
        $region16: #{tpu_custom_call.1} parent=11 // pred_fallthru
          _
      $region12: #{tpu_custom_call.1} parent=5 // pred_fallthru
        _
      %p183 = scmp.lt.s32.totalorder %s20, 2
      // Predicated region
      $region17: #{tpu_custom_call.1} parent=5 // pred_check
        %p184 = pneg %p183
      $region18: #{tpu_custom_call.1} parent=5 // pred_check_branch
        %186 = sbr.rel (%p184) target = $region20
      $region19: #{tpu_custom_call.1} parent=5 // pred_region
        // Predicated region
        $region21: #{tpu_custom_call.1} parent=19 // pred_check
          %p187 = pneg %p54
        $region22: #{tpu_custom_call.1} parent=19 // pred_check_branch
          %189 = sbr.rel (%p187) target = $region24
        $region23: #{tpu_custom_call.1} parent=19 // pred_region
          %s190 = sand.u32 %s44, 1
          %s191 = scalar_lea.sflag [#allocation3], %s190
          %s192 = sand.u32 %s44, 1
          %s193 = smul.addr %s192, 8
          %s194 = scalar_lea.vmem [#allocation2], %s193
          %s195 = smul.u32 2, %s28
          %197 = vsyncadd %s191, 0
          %s198 = smul.addr %s27, 2
          %s199 = sadd.s32 %s195, %s198
          %s200 = smul.addr %s199, 4
          %s201 = scalar_lea.hbm %s0, %s200
          %s203 = sshll.u32 %s201, 4
          %s204 = int_to_ptr.hbm [resolvable:$true] %s203
          %s205 = sshll.u32 %s194, 4
          %s206 = int_to_ptr.vmem [resolvable:$true] %s205
          %208 = dma.hbm_to_vmem [thread:$0]  %s204, 128, %s206, %s191
        $region24: #{tpu_custom_call.1} parent=19 // pred_fallthru
          _
        // Predicated region
        $region25: #{tpu_custom_call.1} parent=19 // pred_check
          %p209 = pneg %p82
        $region26: #{tpu_custom_call.1} parent=19 // pred_check_branch
          %211 = sbr.rel (%p209) target = $region28
        $region27: #{tpu_custom_call.1} parent=19 // pred_region
          %s212 = smul.u32 2, %s28
          %p213 = scmp.lt.s32.totalorder %s27, 1
          %s214 = scalar_select %p213, %s27, 1
          %p215 = scmp.lt.s32.totalorder %s212, 1
          %s216 = scalar_select %p215, %s212, 1
          %s217 = smul.addr %s214, 2
          %s218 = sadd.s32 %s216, %s217
          %s219 = scalar_lea.vmem %s1, %s218
          %s220 = smul.u32 2, %s28
        $region28: #{tpu_custom_call.1} parent=19 // pred_fallthru
          _
      $region20: #{tpu_custom_call.1} parent=5 // pred_fallthru
        _
      %p221 = scmp.le.s32.totalorder 1, %s20
      %p222 = scmp.lt.s32.totalorder %s20, 3
      %p223 = pnand %p221, %p222
      %p224 = pneg %p223
      // Predicated region
      $region29: #{tpu_custom_call.1} parent=5 // pred_check
        _
      $region30: #{tpu_custom_call.1} parent=5 // pred_check_branch
        %226 = sbr.rel (%p223) target = $region32
      $region31: #{tpu_custom_call.1} parent=5 // pred_region
        %s227 = ssub.s32 %s20, 1
        %s228 = sand.u32 %s47, 1
        %s229 = scalar_lea.sflag [#allocation3], %s228
        %s230 = sand.u32 %s47, 1
        %s231 = smul.addr %s230, 8
        %s232 = scalar_lea.vmem [#allocation2], %s231
        // Predicated region
        $region33: #{tpu_custom_call.1} parent=31 // pred_check
          %p233 = pneg %p60
        $region34: #{tpu_custom_call.1} parent=31 // pred_check_branch
          %235 = sbr.rel (%p233) target = $region36
        $region35: #{tpu_custom_call.1} parent=31 // pred_region
          %237 = dma.done %s229, 128
        $region36: #{tpu_custom_call.1} parent=31 // pred_fallthru
          _
        %s238 = sand.u32 %s47, 1
        %s239 = scalar_lea.sflag [#allocation3], %s238
        %s240 = sand.u32 %s47, 1
        %s241 = smul.addr %s240, 8
        %s242 = scalar_lea.vmem [#allocation2], %s241
        %p243 = pneg %p60
        %p244 = pneg %p57
        %s245 = smul.u32 2, %s30
        %p246 = scmp.lt.s32.totalorder %s29, 1
        %s247 = scalar_select %p246, %s29, 1
        %p248 = scmp.lt.s32.totalorder %s245, 1
        %s249 = scalar_select %p248, %s245, 1
        %s250 = smul.addr %s247, 2
        %s251 = sadd.s32 %s249, %s250
        %s252 = scalar_lea.vmem %s1, %s251
        %p253 = pneg %p88
        %p254 = pneg %p85
        %p255 = pneg %p109
        %p256 = pneg %p106
        %p257 = pneg %p137
        %p258 = pneg %p134
        %s259 = sand.u32 %s124, 1
        %s260 = scalar_lea.sflag [#allocation4], %s259
        %s261 = sand.u32 %s124, 1
        %s262 = scalar_lea.vmem [#allocation5], %s261
        %p263 = pneg %p165
        %p264 = pneg %p162
        %s265 = sand.u32 %s152, 1
        %s266 = scalar_lea.sflag [#allocation7], %s265
        %s267 = sand.u32 %s152, 1
        %s268 = scalar_lea.vmem [#allocation6], %s267
        %s269 = smul.u32 2, %s30
        %s270 = smul.u32 2, %s30
        %p271 = scmp.lt.s32.totalorder %s29, 1
        %s272 = scalar_select %p271, %s29, 1
        %p273 = scmp.lt.s32.totalorder %s270, 1
        %s274 = scalar_select %p273, %s270, 1
        %s275 = smul.addr %s272, 2
        %s276 = sadd.s32 %s274, %s275
        %s277 = scalar_lea.vmem %s1, %s276
        %s278 = smul.u32 2, %s30
        %s279 = sadd.s32 %s29, %s30
        %s280 = sadd.s32 %s29, %s30
        %s281 = smul.u32 %s30, 256
        %v282 = vld [vmem:[%s232] sm:$0xff]
        %v283 = vld [vmem:[%s277] sm:$0x3]
        %v284 = vlaneseq
        %v285 = vand.u32 %v284, 127
        %v286 = vadd.s32 %v285, 128
        %v287 = vstv %s281
        %v288 = vadd.s32 %v287, %v285
        %v289 = vadd.s32 %v287, %v286
        %vm290 = vcmp.lt.s32.totalorder %v288, 256
        %vm291 = vcmp.lt.s32.totalorder %v289, 256
        %293 = vst [vmem:[#allocation1] ss:$2 sm:$0xff] %v282
        %v294 = vld.sshfl [vmem:[#allocation1] sm:$0xff pattern:$0x75316420]
        %v295 = vld.sshfl [vmem:[#allocation1 + $0x8] sm:$0xff pattern:$0x75316420]
        %vm298 = vcmask 1043456
        %v299 = vsel %vm298, %v294, -inf
        %v300 = vrot.slane %v299, 4
        %v301 = vmax.f32 %v299, %v300
        %v302 = vrot.slane %v301, 2
        %v303 = vmax.f32 %v301, %v302
        %v304 = vrot.slane %v303, 1
        %v305 = vmax.f32 %v303, %v304
        %v306 = vsel %vm298, %v295, -inf
        %v307 = vrot.slane %v306, 4
        %v308 = vmax.f32 %v306, %v307
        %v309 = vrot.slane %v308, 2
        %v310 = vmax.f32 %v308, %v309
        %v311 = vrot.slane %v310, 1
        %v312 = vmax.f32 %v310, %v311
        %v315 = vrot.slane %v312, 4
        %v316 = vsel %vm298, %v305, %v315
        %v318 = vsub.f32 %v282, %v316
        %v319 = vmul.f32 %v318, 1.442695
        %v320 = vpow.pop %v319
        %322 = vst [vmem:[#allocation1] ss:$2 sm:$0xff] %v320
        %v323 = vld.sshfl [vmem:[#allocation1] sm:$0xff pattern:$0x75316420]
        %v324 = vld.sshfl [vmem:[#allocation1 + $0x8] sm:$0xff pattern:$0x75316420]
        %v327 = vsel %vm298, %v323, 0.0
        %v328 = vrot.slane %v327, 4
        %v329 = vadd.f32 %v327, %v328
        %v330 = vrot.slane %v329, 2
        %v331 = vadd.f32 %v329, %v330
        %v332 = vrot.slane %v331, 1
        %v333 = vadd.f32 %v331, %v332
        %v334 = vsel %vm298, %v324, 0.0
        %v335 = vrot.slane %v334, 4
        %v336 = vadd.f32 %v334, %v335
        %v337 = vrot.slane %v336, 2
        %v338 = vadd.f32 %v336, %v337
        %v339 = vrot.slane %v338, 1
        %v340 = vadd.f32 %v338, %v339
        %v341 = vlog2.pop %v333
        %v342 = vmul.f32 %v341, 0.6931472
        %v343 = vlog2.pop %v340
        %v344 = vmul.f32 %v343, 0.6931472
        %v345 = vadd.f32 %v342, %v305
        %v346 = vadd.f32 %v344, %v312
        %v347 = vlaneseq
        %v348 = vshrl.u32 %v347, 7
        %v349 = vperm.slane %v283, 0
        %v350 = vperm.slane %v283, 1
        %vm351 = vcmp.eq.s32.totalorder %v348, %v349
        %vm352 = vcmp.eq.s32.totalorder %v348, %v350
        %353 = vst [vmem:[#allocation1] ss:$2 sm:$0xff] %v282
        %v354 = vld.sshfl [vmem:[#allocation1] sm:$0xff pattern:$0x75316420]
        %v355 = vld.sshfl [vmem:[#allocation1 + $0x8] sm:$0xff pattern:$0x75316420]
        %v358 = vsel %vm351, %v354, 0.0
        %v359 = vsel %vm352, %v355, 0.0
        %v360 = vsel %vm298, %v358, 0.0
        %v361 = vrot.slane %v360, 4
        %v362 = vadd.f32 %v360, %v361
        %v363 = vrot.slane %v362, 2
        %v364 = vadd.f32 %v362, %v363
        %v365 = vrot.slane %v364, 1
        %v366 = vadd.f32 %v364, %v365
        %v367 = vsel %vm298, %v359, 0.0
        %v368 = vrot.slane %v367, 4
        %v369 = vadd.f32 %v367, %v368
        %v370 = vrot.slane %v369, 2
        %v371 = vadd.f32 %v369, %v370
        %v372 = vrot.slane %v371, 1
        %v373 = vadd.f32 %v371, %v372
        %v374 = vld [vmem:[%s2] sm:$0xf]
        %vm375 = vcmp.ne.s32.totalorder %v283, 4294967196
        %v376 = vsel %vm375, 1, 0
        %v377 = vperm.slane %v376, 0
        %v378 = vperm.slane %v376, 1
        %vm379 = vcmp.ne.s32.totalorder %v377, 0
        %vm380 = vcmp.ne.s32.totalorder %v378, 0
        %vm381 = vmand %vm290, %vm379
        %vm382 = vmand %vm291, %vm380
        %vm383 = vcmp.ge.s32.totalorder %v283, 0
        %v384 = vsel %vm383, 1, 0
        %v385 = vperm.slane %v384, 0
        %v386 = vperm.slane %v384, 1
        %vm387 = vcmp.ne.s32.totalorder %v385, 0
        %vm388 = vcmp.ne.s32.totalorder %v386, 0
        %vm389 = vmand %vm381, %vm387
        %vm390 = vmand %vm382, %vm388
        %vm391 = vcmp.lt.s32.totalorder %v283, 4
        %v392 = vsel %vm391, 1, 0
        %v393 = vperm.slane %v392, 0
        %v394 = vperm.slane %v392, 1
        %vm395 = vcmp.ne.s32.totalorder %v393, 0
        %vm396 = vcmp.ne.s32.totalorder %v394, 0
        %vm397 = vmand %vm389, %vm395
        %vm398 = vmand %vm390, %vm396
        %400 = vset.pattern.permute.xlu0 0
        %401 = vperm.xlu0 %400, %v374
        %v402 = vpop.permute.xlu0 %401
        %v404 = vsel %vm351, %v402, 0.0
        %v405 = vsel %vm352, %v402, 0.0
        %v406 = vsel %vm298, %v404, 0.0
        %v407 = vrot.slane %v406, 4
        %v408 = vadd.f32 %v406, %v407
        %v409 = vrot.slane %v408, 2
        %v410 = vadd.f32 %v408, %v409
        %v411 = vrot.slane %v410, 1
        %v412 = vadd.f32 %v410, %v411
        %v413 = vsel %vm298, %v405, 0.0
        %v414 = vrot.slane %v413, 4
        %v415 = vadd.f32 %v413, %v414
        %v416 = vrot.slane %v415, 2
        %v417 = vadd.f32 %v415, %v416
        %v418 = vrot.slane %v417, 1
        %v419 = vadd.f32 %v417, %v418
        %v420 = vsel %vm397, %v412, 0.0
        %v421 = vsel %vm398, %v419, 0.0
        %v422 = vsub.f32 %v345, %v366
        %v423 = vsub.f32 %v346, %v373
        %v424 = vmul.f32 %v420, %v422
        %v425 = vmul.f32 %v421, %v423
        %v426 = vsel %vm397, %v424, 0.0
        %v427 = vsel %vm398, %v425, 0.0
        %v428 = vadd.f32 %v426, %v427
        %429 = vst [vmem:[%s262] sm:$0x1] %v428
        %v430 = vadd.f32 %v420, %v421
        %431 = vst [vmem:[%s268] sm:$0x1] %v430
        %s432 = sand.u32 %s124, 1
        %s433 = scalar_lea.sflag [#allocation4], %s432
        %s434 = sand.u32 %s124, 1
        %s435 = scalar_lea.vmem [#allocation5], %s434
        %s436 = sand.u32 %s152, 1
        %s437 = scalar_lea.sflag [#allocation7], %s436
        %s438 = sand.u32 %s152, 1
        %s439 = scalar_lea.vmem [#allocation6], %s438
        // Predicated region
        $region37: #{tpu_custom_call.1} parent=31 // pred_check
          %p440 = pneg %p134
        $region38: #{tpu_custom_call.1} parent=31 // pred_check_branch
          %442 = sbr.rel (%p440) target = $region40
        $region39: #{tpu_custom_call.1} parent=31 // pred_region
          %s443 = sadd.s32 %s29, %s30
          %445 = vsyncadd %s433, 0
          %s446 = scalar_lea.hbm %s3, %s443
          %s448 = sshll.u32 %s435, 4
          %s449 = int_to_ptr.vmem [resolvable:$true] %s448
          %s450 = sshll.u32 %s446, 4
          %s451 = int_to_ptr.hbm [resolvable:$true] %s450
          %453 = dma.vmem_to_hbm [thread:$0]  %s449, 16, %s451, %s433
        $region40: #{tpu_custom_call.1} parent=31 // pred_fallthru
          _
        // Predicated region
        $region41: #{tpu_custom_call.1} parent=31 // pred_check
          %p454 = pneg %p162
        $region42: #{tpu_custom_call.1} parent=31 // pred_check_branch
          %456 = sbr.rel (%p454) target = $region44
        $region43: #{tpu_custom_call.1} parent=31 // pred_region
          %s457 = sadd.s32 %s29, %s30
          %459 = vsyncadd %s437, 0
          %s460 = scalar_lea.hbm %s4, %s457
          %s462 = sshll.u32 %s439, 4
          %s463 = int_to_ptr.vmem [resolvable:$true] %s462
          %s464 = sshll.u32 %s460, 4
          %s465 = int_to_ptr.hbm [resolvable:$true] %s464
          %467 = dma.vmem_to_hbm [thread:$0]  %s463, 16, %s465, %s437
        $region44: #{tpu_custom_call.1} parent=31 // pred_fallthru
          _
      $region32: #{tpu_custom_call.1} parent=5 // pred_fallthru
        _
      %p468 = scmp.le.s32.totalorder 2, %s20
      // Predicated region
      $region45: #{tpu_custom_call.1} parent=5 // pred_check
        %p469 = pneg %p468
      $region46: #{tpu_custom_call.1} parent=5 // pred_check_branch
        %471 = sbr.rel (%p469) target = $region48
      $region47: #{tpu_custom_call.1} parent=5 // pred_region
        %s472 = ssub.s32 %s20, 2
        // Predicated region
        $region49: #{tpu_custom_call.1} parent=47 // pred_check
          %p473 = pneg %p140
        $region50: #{tpu_custom_call.1} parent=47 // pred_check_branch
          %475 = sbr.rel (%p473) target = $region52
        $region51: #{tpu_custom_call.1} parent=47 // pred_region
          %s476 = sand.u32 %s125, 1
          %s477 = scalar_lea.sflag [#allocation4], %s476
          %s478 = sand.u32 %s125, 1
          %s479 = scalar_lea.vmem [#allocation5], %s478
          %481 = dma.done %s477, 16
        $region52: #{tpu_custom_call.1} parent=47 // pred_fallthru
          _
        // Predicated region
        $region53: #{tpu_custom_call.1} parent=47 // pred_check
          %p482 = pneg %p168
        $region54: #{tpu_custom_call.1} parent=47 // pred_check_branch
          %484 = sbr.rel (%p482) target = $region56
        $region55: #{tpu_custom_call.1} parent=47 // pred_region
          %s485 = sand.u32 %s153, 1
          %s486 = scalar_lea.sflag [#allocation7], %s485
          %s487 = sand.u32 %s153, 1
          %s488 = scalar_lea.vmem [#allocation6], %s487
          %490 = dma.done %s486, 16
        $region56: #{tpu_custom_call.1} parent=47 // pred_fallthru
          _
      $region48: #{tpu_custom_call.1} parent=5 // pred_fallthru
        _
    $region6: #{tpu_custom_call.1} parent=1 // loop_footer
      %s24 = sadd.s32 1, %s20
    $region7: #{tpu_custom_call.1} parent=1 // loop_footer_branch
      %19 = sbr.rel target = $region3
    $region8: #{tpu_custom_call.1} parent=1 // loop_exit
      _
    %491 = vsyncpa [#allocation3], 1
    %s492 = scalar_lea.sflag [#allocation3], 1
    %493 = vsyncpa %s492, 1
    %494 = vsyncpa [#allocation4], 1
    %s495 = scalar_lea.sflag [#allocation4], 1
    %496 = vsyncpa %s495, 1
    %497 = vsyncpa [#allocation7], 1
    %s498 = scalar_lea.sflag [#allocation7], 1
    %499 = vsyncpa %s498, 1

</llo_original>
